<compile_context>
chip_gen: v7x
topology: tpu7x:2x2x1
jax: 0.10.0
libtpu: 0.0.40
codegen_flags: <defaults>
</compile_context>

<pallas_src>
import functools

import jax
import jax.numpy as jnp
from jax.experimental import pallas as pl
from jax.experimental.pallas import tpu as pltpu

HIDDEN = 64


def _mlp_kernel(x_ref, w1_ref, b1_ref, w2_ref, b2_ref, w3c_ref, b3_ref, o_ref,
                *, mxu_dtype):
    x = x_ref[...]                                        # (1, TB) f32
    # Layer 1: K=1 contraction == outer product -> VPU broadcast, no MXU trip.
    h1 = jnp.tanh(w1_ref[...] * x + b1_ref[...])          # (64,1)*(1,TB) -> (64,TB)
    # Layer 2: (64,64) @ (64,TB) on the MXU, bf16 operands / f32 accumulate.
    h2 = jnp.tanh(
        jnp.dot(w2_ref[...].astype(mxu_dtype), h1.astype(mxu_dtype),
                preferred_element_type=jnp.float32)
        + b2_ref[...]
    )                                                     # (64, TB) f32
    # Layer 3: M=1 "matmul" -> VPU multiply + sublane (XLU) reduction; the MXU
    # is left alone (its single stationary-weight load per tile stays layer 2).
    o = jnp.sum(w3c_ref[...] * h2, axis=0, keepdims=True) + b3_ref[...]   # (1, TB)
    o_ref[...] = jnp.tanh(o).astype(o_ref.dtype)


def _round_up(n, m):
    return ((n + m - 1) // m) * m


def deep_mlp_forward(x, params, *, tb=4096, min_tiles=2, mxu_dtype=jnp.bfloat16):
    """x: (B, 1) f32.  params in PyTorch layout: w (out, in), b (out, 1).

    tb:        max batch-tile width in lanes (multiple of 128). 4096 works well
               on v5e/v6e/v7x; 8192 is also fine on v6e/v7x for very large B.
    min_tiles: aim for at least this many batch tiles so the "parallel" grid
               axis can shard across v7x's two TensorCores.
    mxu_dtype: operand dtype for the 64x64 MXU matmul (bf16 -> 3x fewer MXU
               passes; pass jnp.float32 for full f32 accuracy).
    """
    B = x.shape[0]
    w1, b1 = params["w1"], params["b1"]
    w2, b2 = params["w2"], params["b2"]
    w3, b3 = params["w3"], params["b3"]
    w3c = w3.reshape(HIDDEN, 1)          # (1,64) -> (64,1) column for the VPU reduce

    # --- batch tile width (lane axis, multiple of 128) ------------------------
    tb = _round_up(max(tb, 128), 128)
    tb_eff = min(tb, _round_up(pl.cdiv(B, min_tiles), 128))   # try for >= min_tiles tiles
    tb_eff = min(max(tb_eff, 128), _round_up(B, 128))         # never wider than padded B
    b_pad = _round_up(B, tb_eff)
    nb = b_pad // tb_eff

    # --- lane-dense input layout: (B,1) -> (1, b_pad) -------------------------
    xt = x.reshape(1, B)
    if b_pad != B:
        # Pad only when needed; padded tail is sliced off after the kernel.
        xt = jnp.pad(xt, ((0, 0), (0, b_pad - B)))

    # Weights/biases are tiny (<20 KB total): full-array blocks with a constant
    # index_map -> VMEM-resident across the whole grid.
    resident = lambda a: pl.BlockSpec(a.shape, lambda i: (0, 0))

    cost = pl.CostEstimate(
        flops=2 * (HIDDEN + HIDDEN * HIDDEN + HIDDEN) * b_pad,
        transcendentals=(2 * HIDDEN + 1) * b_pad,             # three tanh layers
        bytes_accessed=8 * b_pad
        + 4 * (HIDDEN + HIDDEN * HIDDEN + 3 * HIDDEN + 2),
    )

    # VMEM budget: h1/h2 intermediates dominate (2 * 64 * TB * 4 B) plus the
    # double-buffered x/out tiles. Only bump the scoped limit for very wide
    # tiles (relevant on v7x: 64 MiB physical VMEM, 32 MiB default scoped).
    cp_kwargs = dict(dimension_semantics=("parallel",))
    est_vmem = 2 * HIDDEN * tb_eff * 4 + 16 * tb_eff + (1 << 20)
    if est_vmem > (24 << 20):
        cp_kwargs["vmem_limit_bytes"] = min(2 * est_vmem, 100 << 20)

    out_t = pl.pallas_call(
        functools.partial(_mlp_kernel, mxu_dtype=mxu_dtype),
        out_shape=jax.ShapeDtypeStruct((1, b_pad), jnp.float32),
        grid=(nb,),
        in_specs=[
            pl.BlockSpec((1, tb_eff), lambda i: (0, i)),      # x tile
            resident(w1), resident(b1),
            resident(w2), resident(b2),
            resident(w3c), resident(b3),
        ],
        out_specs=pl.BlockSpec((1, tb_eff), lambda i: (0, i)),
        compiler_params=pltpu.CompilerParams(**cp_kwargs),
        cost_estimate=cost,
    )(xt, w1, b1, w2, b2, w3c, b3)

    out = out_t[:, :B] if b_pad != B else out_t
    return out.reshape(B, 1)


def init_params(key):
    """PyTorch nn.Linear default init: U(-1/sqrt(fan_in), 1/sqrt(fan_in)).
    Stored in PyTorch layout: w (out, in), b (out, 1)."""
    ks = jax.random.split(key, 6)

    def linear(kw, kb, fan_in, fan_out):
        bound = 1.0 / jnp.sqrt(jnp.float32(fan_in))
        w = jax.random.uniform(kw, (fan_out, fan_in), jnp.float32, -bound, bound)
        b = jax.random.uniform(kb, (fan_out, 1), jnp.float32, -bound, bound)
        return w, b

    w1, b1 = linear(ks[0], ks[1], 1, HIDDEN)
    w2, b2 = linear(ks[2], ks[3], HIDDEN, HIDDEN)
    w3, b3 = linear(ks[4], ks[5], HIDDEN, 1)
    return {"w1": w1, "b1": b1, "w2": w2, "b2": b2, "w3": w3, "b3": b3}


def reference_forward(x, params):
    h1 = jnp.tanh(x @ params["w1"].T + params["b1"].T)
    h2 = jnp.tanh(h1 @ params["w2"].T + params["b2"].T)
    return jnp.tanh(h2 @ params["w3"].T + params["b3"].T)


if __name__ == "__main__":
    key = jax.random.PRNGKey(0)
    kx, kp = jax.random.split(key)
    params = init_params(kp)

    # Small demo batch (padded internally to one 128-wide lane tile).
    B = 8
    x = jax.random.normal(kx, (B, 1), jnp.float32)
    out = jax.block_until_ready(deep_mlp_forward(x, params))
    ref = reference_forward(x, params)
    assert out.shape == (B, 1)
    # Layer 2 runs with bf16 MXU operands (f32 accumulate) -> relaxed tolerance.
    assert jnp.allclose(out, ref, atol=1e-2, rtol=1e-2), "mismatch vs JAX reference"

    # Second small shape where B divides the tile width (no pad copy) and
    # nb == 2, exercising the multi-tile / v7x two-TensorCore path.
    B2 = 256
    x2 = jax.random.normal(kx, (B2, 1), jnp.float32)
    out2 = jax.block_until_ready(deep_mlp_forward(x2, params))
    ref2 = reference_forward(x2, params)
    assert out2.shape == (B2, 1)
    assert jnp.allclose(out2, ref2, atol=1e-2, rtol=1e-2), "mismatch vs JAX reference (B=256)"

    print("KERNEL_OK")
</pallas_src>

<mosaic_0001>
module attributes {stable_mosaic.version = 11 : i64} {
  func.func @_mlp_kernel(%arg0: i32, %arg1: memref<1x128xf32, #tpu.memory_space<vmem>>, %arg2: memref<64x1xf32, #tpu.memory_space<vmem>>, %arg3: memref<64x1xf32, #tpu.memory_space<vmem>>, %arg4: memref<64x64xf32, #tpu.memory_space<vmem>>, %arg5: memref<64x1xf32, #tpu.memory_space<vmem>>, %arg6: memref<64x1xf32, #tpu.memory_space<vmem>>, %arg7: memref<1x1xf32, #tpu.memory_space<vmem>>, %arg8: memref<1x128xf32, #tpu.memory_space<vmem>>) attributes {dimension_semantics = [#tpu.dimension_semantics<parallel>], iteration_bounds = array<i64: 1>, scalar_prefetch = 0 : i64, scratch_operands = 0 : i64, tpu.core_type = #tpu.core_type<tc>, window_params = [{transform_indices = @transform_0, window_bounds = array<i64: 1, 128>}, {pipeline_mode = #tpu.pipeline_mode<synchronous>, transform_indices = @transform_1, window_bounds = array<i64: 64, 1>}, {pipeline_mode = #tpu.pipeline_mode<synchronous>, transform_indices = @transform_2, window_bounds = array<i64: 64, 1>}, {pipeline_mode = #tpu.pipeline_mode<synchronous>, transform_indices = @transform_3, window_bounds = array<i64: 64, 64>}, {pipeline_mode = #tpu.pipeline_mode<synchronous>, transform_indices = @transform_4, window_bounds = array<i64: 64, 1>}, {pipeline_mode = #tpu.pipeline_mode<synchronous>, transform_indices = @transform_5, window_bounds = array<i64: 64, 1>}, {pipeline_mode = #tpu.pipeline_mode<synchronous>, transform_indices = @transform_6, window_bounds = array<i64: 1, 1>}, {transform_indices = @transform_7, window_bounds = array<i64: 1, 128>}]} {
    %c0 = arith.constant 0 : index
    %c0_0 = arith.constant 0 : index
    %0 = vector.load %arg1[%c0, %c0_0] : memref<1x128xf32, #tpu.memory_space<vmem>>, vector<1x128xf32>
    %c0_1 = arith.constant 0 : index
    %c0_2 = arith.constant 0 : index
    %1 = vector.load %arg2[%c0_1, %c0_2] : memref<64x1xf32, #tpu.memory_space<vmem>>, vector<64x1xf32>
    %2 = vector.broadcast %1 : vector<64x1xf32> to vector<64x128xf32>
    %3 = vector.broadcast %0 : vector<1x128xf32> to vector<64x128xf32>
    %4 = arith.mulf %2, %3 : vector<64x128xf32>
    %c0_3 = arith.constant 0 : index
    %c0_4 = arith.constant 0 : index
    %5 = vector.load %arg3[%c0_3, %c0_4] : memref<64x1xf32, #tpu.memory_space<vmem>>, vector<64x1xf32>
    %6 = vector.broadcast %5 : vector<64x1xf32> to vector<64x128xf32>
    %7 = arith.addf %4, %6 : vector<64x128xf32>
    %8 = math.tanh %7 : vector<64x128xf32>
    %c0_5 = arith.constant 0 : index
    %c0_6 = arith.constant 0 : index
    %9 = vector.load %arg4[%c0_5, %c0_6] : memref<64x64xf32, #tpu.memory_space<vmem>>, vector<64x64xf32>
    %10 = arith.truncf %9 : vector<64x64xf32> to vector<64x64xbf16>
    %11 = arith.truncf %8 : vector<64x128xf32> to vector<64x128xbf16>
    %cst = arith.constant dense<0.000000e+00> : vector<64x128xf32>
    %12 = tpu.matmul %10, %11, %cst {dimension_numbers = #tpu.dot_dimension_numbers<[1], [0], [0], [1], [0, 0, 1, 1], [], []>} : vector<64x64xbf16>, vector<64x128xbf16>, vector<64x128xf32> -> vector<64x128xf32>
    %c0_7 = arith.constant 0 : index
    %c0_8 = arith.constant 0 : index
    %13 = vector.load %arg5[%c0_7, %c0_8] : memref<64x1xf32, #tpu.memory_space<vmem>>, vector<64x1xf32>
    %14 = vector.broadcast %13 : vector<64x1xf32> to vector<64x128xf32>
    %15 = arith.addf %12, %14 : vector<64x128xf32>
    %16 = math.tanh %15 : vector<64x128xf32>
    %c0_9 = arith.constant 0 : index
    %c0_10 = arith.constant 0 : index
    %17 = vector.load %arg6[%c0_9, %c0_10] : memref<64x1xf32, #tpu.memory_space<vmem>>, vector<64x1xf32>
    %18 = vector.broadcast %17 : vector<64x1xf32> to vector<64x128xf32>
    %19 = arith.mulf %18, %16 : vector<64x128xf32>
    %cst_11 = arith.constant dense<0.000000e+00> : vector<128xf32>
    %20 = vector.multi_reduction <add>, %19, %cst_11 [0] : vector<64x128xf32> to vector<128xf32>
    %21 = vector.shape_cast %20 : vector<128xf32> to vector<1x128xf32>
    %c0_12 = arith.constant 0 : index
    %c0_13 = arith.constant 0 : index
    %22 = vector.load %arg7[%c0_12, %c0_13] : memref<1x1xf32, #tpu.memory_space<vmem>>, vector<1x1xf32>
    %23 = vector.broadcast %22 : vector<1x1xf32> to vector<1x128xf32>
    %24 = arith.addf %21, %23 : vector<1x128xf32>
    %25 = math.tanh %24 : vector<1x128xf32>
    %c0_14 = arith.constant 0 : index
    %c0_15 = arith.constant 0 : index
    %26 = vector.load %arg8[%c0_14, %c0_15] : memref<1x128xf32, #tpu.memory_space<vmem>>, vector<1x128xf32>
    tpu.vector_store %arg8[%c0_14, %c0_15], %25 {strides = array<i32>} : memref<1x128xf32, #tpu.memory_space<vmem>>, vector<1x128xf32>,
    return
  }
  func.func @transform_0(%arg0: i32) -> (i32, i32) {
    %c0_i32 = arith.constant 0 : i32
    %c0_i32_0 = arith.constant 0 : i32
    return %c0_i32, %arg0 : i32, i32
  }
  func.func @transform_1(%arg0: i32) -> (i32, i32) {
    %c0_i32 = arith.constant 0 : i32
    %c0_i32_0 = arith.constant 0 : i32
    %c0_i32_1 = arith.constant 0 : i32
    return %c0_i32, %c0_i32_0 : i32, i32
  }
  func.func @transform_2(%arg0: i32) -> (i32, i32) {
    %c0_i32 = arith.constant 0 : i32
    %c0_i32_0 = arith.constant 0 : i32
    %c0_i32_1 = arith.constant 0 : i32
    return %c0_i32, %c0_i32_0 : i32, i32
  }
  func.func @transform_3(%arg0: i32) -> (i32, i32) {
    %c0_i32 = arith.constant 0 : i32
    %c0_i32_0 = arith.constant 0 : i32
    %c0_i32_1 = arith.constant 0 : i32
    return %c0_i32, %c0_i32_0 : i32, i32
  }
  func.func @transform_4(%arg0: i32) -> (i32, i32) {
    %c0_i32 = arith.constant 0 : i32
    %c0_i32_0 = arith.constant 0 : i32
    %c0_i32_1 = arith.constant 0 : i32
    return %c0_i32, %c0_i32_0 : i32, i32
  }
  func.func @transform_5(%arg0: i32) -> (i32, i32) {
    %c0_i32 = arith.constant 0 : i32
    %c0_i32_0 = arith.constant 0 : i32
    %c0_i32_1 = arith.constant 0 : i32
    return %c0_i32, %c0_i32_0 : i32, i32
  }
  func.func @transform_6(%arg0: i32) -> (i32, i32) {
    %c0_i32 = arith.constant 0 : i32
    %c0_i32_0 = arith.constant 0 : i32
    %c0_i32_1 = arith.constant 0 : i32
    return %c0_i32, %c0_i32_0 : i32, i32
  }
  func.func @transform_7(%arg0: i32) -> (i32, i32) {
    %c0_i32 = arith.constant 0 : i32
    %c0_i32_0 = arith.constant 0 : i32
    return %c0_i32, %arg0 : i32, i32
  }
}

</mosaic_0001>

<llo_original>
// kernel: tpu_custom_call.1
$region0: #{tpu_custom_call.1}
  #allocation0 [shape = 'u32[]', space=smem, size = 0x4, offset = 0x4, fixed_abs, tag = 'smem constant byte address 0x4 - core index']
  #allocation1 [shape = 'u32[144,128]{1,0:T(1,128)}', space=vmem, size = 0x12000, scoped, tag = 'internal scratch']
  #allocation2 [shape = 'f32[1,1]{1,0:T(1,128)S(1)}', space=vmem, size = 0x200, scoped, tag = 'scoped memory for tpu_custom_call.1']
  %s0 = inlined_call_operand.vmem [shape: f32[1,128], index: 0, kind: input, shape index: {}]
  %s1 = inlined_call_operand.vmem [shape: f32[64,1], index: 1, kind: input, shape index: {}]
  %s2 = inlined_call_operand.vmem [shape: f32[64,1], index: 2, kind: input, shape index: {}]
  %s3 = inlined_call_operand.vmem [shape: f32[64,64], index: 3, kind: input, shape index: {}]
  %s4 = inlined_call_operand.vmem [shape: f32[64,1], index: 4, kind: input, shape index: {}]
  %s5 = inlined_call_operand.vmem [shape: f32[64,1], index: 5, kind: input, shape index: {}]
  %s6 = inlined_call_operand.<no memory space> [shape: f32[1,1], index: 6, kind: input, shape index: {}]
  %s7 = inlined_call_operand.hbm [shape: f32[1,128], index: 7, kind: output, shape index: {}]
  %s8 = sld [smem:[#allocation0]]
  $region38: #{tpu_custom_call.1} parent=0
    _
  %s10 = ssub.s32 1, %s8
  %s11 = scalar_select 0, %s10, %s8
  %v12 = vstv %s6
  %13 = vst [vmem:[#allocation2] sm:$0x1] %v12
  $region1: #{tpu_custom_call.1} parent=0
    #allocation3 [shape = 'u8[512]{0}', space=vmem, size = 0x400, scoped, tag = 'output window, operand 0, single buffered']
    #allocation4 [shape = 's32[1]{0}', space=sflag, size = 0x4, scoped, tag = 'scoped memory for tpu_custom_call.1']
    %14 = vsyncpa [#allocation4], 0
    // Predicated region
    $region2: #{tpu_custom_call.1} parent=1 // pred_check
      _
    $region3: #{tpu_custom_call.1} parent=1 // pred_check_branch
      %16 = sbr.rel (0) target = $region5
    $region4: #{tpu_custom_call.1} parent=1 // pred_region
      _
    $region5: #{tpu_custom_call.1} parent=1 // pred_fallthru
      _
    // Predicated region
    $region6: #{tpu_custom_call.1} parent=1 // pred_check
      _
    $region7: #{tpu_custom_call.1} parent=1 // pred_check_branch
      %18 = sbr.rel (0) target = $region9
    $region8: #{tpu_custom_call.1} parent=1 // pred_region
      _
    $region9: #{tpu_custom_call.1} parent=1 // pred_fallthru
      _
    // Predicated region
    $region10: #{tpu_custom_call.1} parent=1 // pred_check
      _
    $region11: #{tpu_custom_call.1} parent=1 // pred_check_branch
      %20 = sbr.rel (0) target = $region13
    $region12: #{tpu_custom_call.1} parent=1 // pred_region
      _
    $region13: #{tpu_custom_call.1} parent=1 // pred_fallthru
      _
    // Predicated region
    $region14: #{tpu_custom_call.1} parent=1 // pred_check
      _
    $region15: #{tpu_custom_call.1} parent=1 // pred_check_branch
      %22 = sbr.rel (0) target = $region17
    $region16: #{tpu_custom_call.1} parent=1 // pred_region
      _
    $region17: #{tpu_custom_call.1} parent=1 // pred_fallthru
      _
    // Predicated region
    $region18: #{tpu_custom_call.1} parent=1 // pred_check
      _
    $region19: #{tpu_custom_call.1} parent=1 // pred_check_branch
      %24 = sbr.rel (0) target = $region21
    $region20: #{tpu_custom_call.1} parent=1 // pred_region
      _
    $region21: #{tpu_custom_call.1} parent=1 // pred_fallthru
      _
    // Predicated region
    $region22: #{tpu_custom_call.1} parent=1 // pred_check
      _
    $region23: #{tpu_custom_call.1} parent=1 // pred_check_branch
      %26 = sbr.rel (0) target = $region25
    $region24: #{tpu_custom_call.1} parent=1 // pred_region
      _
    $region25: #{tpu_custom_call.1} parent=1 // pred_fallthru
      _
    // Predicated region
    $region26: #{tpu_custom_call.1} parent=1 // pred_check
      _
    $region27: #{tpu_custom_call.1} parent=1 // pred_check_branch
      %28 = sbr.rel (0) target = $region29
    $region28: #{tpu_custom_call.1} parent=1 // pred_region
      _
    $region29: #{tpu_custom_call.1} parent=1 // pred_fallthru
      _
    %v30 = vld [vmem:[%s0] sm:$0x1]
    %v31 = vld [vmem:[%s1] sm:$0xff]
    %v32 = vld [vmem:[%s1 + $0x8] sm:$0xff]
    %v33 = vld [vmem:[%s1 + $0x10] sm:$0xff]
    %v34 = vld [vmem:[%s1 + $0x18] sm:$0xff]
    %v35 = vld [vmem:[%s1 + $0x20] sm:$0xff]
    %v36 = vld [vmem:[%s1 + $0x28] sm:$0xff]
    %v37 = vld [vmem:[%s1 + $0x30] sm:$0xff]
    %v38 = vld [vmem:[%s1 + $0x38] sm:$0xff]
    %40 = vset.pattern.permute.xlu0 0
    %41 = vperm.xlu0 %40, %v31
    %v42 = vpop.permute.xlu0 %41
    %45 = vset.pattern.permute.xlu0 0
    %46 = vperm.xlu0 %45, %v32
    %v47 = vpop.permute.xlu0 %46
    %50 = vset.pattern.permute.xlu0 0
    %51 = vperm.xlu0 %50, %v33
    %v52 = vpop.permute.xlu0 %51
    %55 = vset.pattern.permute.xlu0 0
    %56 = vperm.xlu0 %55, %v34
    %v57 = vpop.permute.xlu0 %56
    %60 = vset.pattern.permute.xlu0 0
    %61 = vperm.xlu0 %60, %v35
    %v62 = vpop.permute.xlu0 %61
    %65 = vset.pattern.permute.xlu0 0
    %66 = vperm.xlu0 %65, %v36
    %v67 = vpop.permute.xlu0 %66
    %70 = vset.pattern.permute.xlu0 0
    %71 = vperm.xlu0 %70, %v37
    %v72 = vpop.permute.xlu0 %71
    %75 = vset.pattern.permute.xlu0 0
    %76 = vperm.xlu0 %75, %v38
    %v77 = vpop.permute.xlu0 %76
    %v80 = vlaneseq
    %v81 = vshrl.u32 %v80, 7
    %v82 = vsub.s32 0, %v81
    %v83 = vrot.slane %v30, %v82
    %v85 = vmul.f32 %v42, %v83
    %v86 = vmul.f32 %v47, %v83
    %v87 = vmul.f32 %v52, %v83
    %v88 = vmul.f32 %v57, %v83
    %v89 = vmul.f32 %v62, %v83
    %v90 = vmul.f32 %v67, %v83
    %v91 = vmul.f32 %v72, %v83
    %v92 = vmul.f32 %v77, %v83
    %v93 = vld [vmem:[%s2] sm:$0xff]
    %v94 = vld [vmem:[%s2 + $0x8] sm:$0xff]
    %v95 = vld [vmem:[%s2 + $0x10] sm:$0xff]
    %v96 = vld [vmem:[%s2 + $0x18] sm:$0xff]
    %v97 = vld [vmem:[%s2 + $0x20] sm:$0xff]
    %v98 = vld [vmem:[%s2 + $0x28] sm:$0xff]
    %v99 = vld [vmem:[%s2 + $0x30] sm:$0xff]
    %v100 = vld [vmem:[%s2 + $0x38] sm:$0xff]
    %102 = vset.pattern.permute.xlu0 0
    %103 = vperm.xlu0 %102, %v93
    %v104 = vpop.permute.xlu0 %103
    %107 = vset.pattern.permute.xlu0 0
    %108 = vperm.xlu0 %107, %v94
    %v109 = vpop.permute.xlu0 %108
    %112 = vset.pattern.permute.xlu0 0
    %113 = vperm.xlu0 %112, %v95
    %v114 = vpop.permute.xlu0 %113
    %117 = vset.pattern.permute.xlu0 0
    %118 = vperm.xlu0 %117, %v96
    %v119 = vpop.permute.xlu0 %118
    %122 = vset.pattern.permute.xlu0 0
    %123 = vperm.xlu0 %122, %v97
    %v124 = vpop.permute.xlu0 %123
    %127 = vset.pattern.permute.xlu0 0
    %128 = vperm.xlu0 %127, %v98
    %v129 = vpop.permute.xlu0 %128
    %132 = vset.pattern.permute.xlu0 0
    %133 = vperm.xlu0 %132, %v99
    %v134 = vpop.permute.xlu0 %133
    %137 = vset.pattern.permute.xlu0 0
    %138 = vperm.xlu0 %137, %v100
    %v139 = vpop.permute.xlu0 %138
    %v141 = vadd.f32 %v85, %v104
    %v142 = vadd.f32 %v86, %v109
    %v143 = vadd.f32 %v87, %v114
    %v144 = vadd.f32 %v88, %v119
    %v145 = vadd.f32 %v89, %v124
    %v146 = vadd.f32 %v90, %v129
    %v147 = vadd.f32 %v91, %v134
    %v148 = vadd.f32 %v92, %v139
    %v149 = vtanh.pop %v141
    %v150 = vtanh.pop %v142
    %v151 = vtanh.pop %v143
    %v152 = vtanh.pop %v144
    %v153 = vtanh.pop %v145
    %v154 = vtanh.pop %v146
    %v155 = vtanh.pop %v147
    %v156 = vtanh.pop %v148
    %v157 = vld [vmem:[%s3] sm:$0xff]
    %v158 = vld [vmem:[%s3 + $0x8] sm:$0xff]
    %v159 = vld [vmem:[%s3 + $0x10] sm:$0xff]
    %v160 = vld [vmem:[%s3 + $0x18] sm:$0xff]
    %v161 = vld [vmem:[%s3 + $0x20] sm:$0xff]
    %v162 = vld [vmem:[%s3 + $0x28] sm:$0xff]
    %v163 = vld [vmem:[%s3 + $0x30] sm:$0xff]
    %v164 = vld [vmem:[%s3 + $0x38] sm:$0xff]
    %v165 = vpack.c.bf16 %v158, %v157
    %v166 = vpack.c.bf16 %v160, %v159
    %v167 = vpack.c.bf16 %v162, %v161
    %v168 = vpack.c.bf16 %v164, %v163
    %v169 = vpack.c.bf16 %v150, %v149
    %v170 = vpack.c.bf16 %v152, %v151
    %v171 = vpack.c.bf16 %v154, %v153
    %v172 = vpack.c.bf16 %v156, %v155
    %v173 = vld [vmem:[%s4] sm:$0xff]
    %v174 = vld [vmem:[%s4 + $0x8] sm:$0xff]
    %v175 = vld [vmem:[%s4 + $0x10] sm:$0xff]
    %v176 = vld [vmem:[%s4 + $0x18] sm:$0xff]
    %v177 = vld [vmem:[%s4 + $0x20] sm:$0xff]
    %v178 = vld [vmem:[%s4 + $0x28] sm:$0xff]
    %v179 = vld [vmem:[%s4 + $0x30] sm:$0xff]
    %v180 = vld [vmem:[%s4 + $0x38] sm:$0xff]
    %182 = vset.pattern.permute.xlu0 0
    %183 = vperm.xlu0 %182, %v173
    %v184 = vpop.permute.xlu0 %183
    %187 = vset.pattern.permute.xlu0 0
    %188 = vperm.xlu0 %187, %v174
    %v189 = vpop.permute.xlu0 %188
    %192 = vset.pattern.permute.xlu0 0
    %193 = vperm.xlu0 %192, %v175
    %v194 = vpop.permute.xlu0 %193
    %197 = vset.pattern.permute.xlu0 0
    %198 = vperm.xlu0 %197, %v176
    %v199 = vpop.permute.xlu0 %198
    %202 = vset.pattern.permute.xlu0 0
    %203 = vperm.xlu0 %202, %v177
    %v204 = vpop.permute.xlu0 %203
    %207 = vset.pattern.permute.xlu0 0
    %208 = vperm.xlu0 %207, %v178
    %v209 = vpop.permute.xlu0 %208
    %212 = vset.pattern.permute.xlu0 0
    %213 = vperm.xlu0 %212, %v179
    %v214 = vpop.permute.xlu0 %213
    %217 = vset.pattern.permute.xlu0 0
    %218 = vperm.xlu0 %217, %v180
    %v219 = vpop.permute.xlu0 %218
    %vm221 = vcmask 523264
    %v223 = vsel %vm221, %v165, 0
    %v226 = vsel %vm221, %v166, 0
    %v229 = vsel %vm221, %v167, 0
    %v232 = vsel %vm221, %v168, 0
    %234 = vmatprep.subr.bf16.mxu0 0
    %235 = vmatpush1.bf16.msra.mxu0 %v169
    %236 = vmatprep.subr.bf16.mxu0 0
    %237 = vmatpush1.bf16.msra.mxu0 %v170
    %238 = vmatprep.subr.bf16.mxu0 0
    %239 = vmatpush1.bf16.msra.mxu0 %v171
    %240 = vmatprep.subr.bf16.mxu0 0
    %241 = vmatpush1.bf16.msra.mxu0 %v172
    %242 = vmatprep.subr.bf16.mxu0 0
    %243 = vmatpush1.bf16.msra.mxu0 0
    %244 = vmatprep.subr.bf16.mxu0 0
    %245 = vmatpush1.bf16.msra.mxu0 0
    %246 = vmatprep.subr.bf16.mxu0 0
    %247 = vmatpush1.bf16.msra.mxu0 0
    %248 = vmatprep.subr.bf16.mxu0 0
    %249 = vmatpush1.bf16.msra.mxu0 0
    %250 = vmatprep.subr.bf16.mxu0 0
    %251 = vmatpush1.bf16.msra.mxu0 0
    %252 = vmatprep.subr.bf16.mxu0 0
    %253 = vmatpush1.bf16.msra.mxu0 0
    %254 = vmatprep.subr.bf16.mxu0 0
    %255 = vmatpush1.bf16.msra.mxu0 0
    %256 = vmatprep.subr.bf16.mxu0 0
    %257 = vmatpush1.bf16.msra.mxu0 0
    %258 = vmatprep.subr.bf16.mxu0 0
    %259 = vmatpush1.bf16.msra.mxu0 0
    %260 = vmatprep.subr.bf16.mxu0 0
    %261 = vmatpush1.bf16.msra.mxu0 0
    %262 = vmatprep.subr.bf16.mxu0 0
    %263 = vmatpush1.bf16.msra.mxu0 0
    %264 = vmatprep.subr.bf16.mxu0 0
    %265 = vmatpush1.bf16.msra.mxu0 0
    %266 = vmatprep.mubr.bf16.mxu0 0
    %267 = vmatmul.mubr.bf16.gmra.mrb[0].mxu0 %v223
    %v268 = vpop.f32.mrb[0].mxu0
    %v269 = vadd.f32 %v184, %v268
    %v270 = vpop.f32.mrb[0].mxu0
    %v271 = vpop.f32.mrb[0].mxu0
    %v272 = vadd.f32 %v189, %v271
    %v273 = vpop.f32.mrb[0].mxu0
    %274 = vmatprep.mubr.bf16.mxu0 0
    %275 = vmatmul.mubr.bf16.gmra.mrb[0].mxu0 %v226
    %v276 = vpop.f32.mrb[0].mxu0
    %v277 = vadd.f32 %v194, %v276
    %v278 = vpop.f32.mrb[0].mxu0
    %v279 = vpop.f32.mrb[0].mxu0
    %v280 = vadd.f32 %v199, %v279
    %v281 = vpop.f32.mrb[0].mxu0
    %282 = vmatprep.mubr.bf16.mxu0 0
    %283 = vmatmul.mubr.bf16.gmra.mrb[0].mxu0 %v229
    %v284 = vpop.f32.mrb[0].mxu0
    %v285 = vadd.f32 %v204, %v284
    %v286 = vpop.f32.mrb[0].mxu0
    %v287 = vpop.f32.mrb[0].mxu0
    %v288 = vadd.f32 %v209, %v287
    %v289 = vpop.f32.mrb[0].mxu0
    %290 = vmatprep.mubr.bf16.mxu0 0
    %291 = vmatmul.mubr.bf16.gmra.mrb[0].mxu0 %v232
    %v292 = vpop.f32.mrb[0].mxu0
    %v293 = vadd.f32 %v214, %v292
    %v294 = vpop.f32.mrb[0].mxu0
    %v295 = vpop.f32.mrb[0].mxu0
    %v296 = vadd.f32 %v219, %v295
    %v297 = vpop.f32.mrb[0].mxu0
    %298 = vdwg.mxu0
    %v299 = vtanh.pop %v269
    %v300 = vtanh.pop %v272
    %v301 = vtanh.pop %v277
    %v302 = vtanh.pop %v280
    %v303 = vtanh.pop %v285
    %v304 = vtanh.pop %v288
    %v305 = vtanh.pop %v293
    %v306 = vtanh.pop %v296
    %v307 = vld [vmem:[%s5] sm:$0xff]
    %v308 = vld [vmem:[%s5 + $0x8] sm:$0xff]
    %v309 = vld [vmem:[%s5 + $0x10] sm:$0xff]
    %v310 = vld [vmem:[%s5 + $0x18] sm:$0xff]
    %v311 = vld [vmem:[%s5 + $0x20] sm:$0xff]
    %v312 = vld [vmem:[%s5 + $0x28] sm:$0xff]
    %v313 = vld [vmem:[%s5 + $0x30] sm:$0xff]
    %v314 = vld [vmem:[%s5 + $0x38] sm:$0xff]
    %316 = vset.pattern.permute.xlu0 0
    %317 = vperm.xlu0 %316, %v307
    %v318 = vpop.permute.xlu0 %317
    %321 = vset.pattern.permute.xlu0 0
    %322 = vperm.xlu0 %321, %v308
    %v323 = vpop.permute.xlu0 %322
    %326 = vset.pattern.permute.xlu0 0
    %327 = vperm.xlu0 %326, %v309
    %v328 = vpop.permute.xlu0 %327
    %331 = vset.pattern.permute.xlu0 0
    %332 = vperm.xlu0 %331, %v310
    %v333 = vpop.permute.xlu0 %332
    %336 = vset.pattern.permute.xlu0 0
    %337 = vperm.xlu0 %336, %v311
    %v338 = vpop.permute.xlu0 %337
    %341 = vset.pattern.permute.xlu0 0
    %342 = vperm.xlu0 %341, %v312
    %v343 = vpop.permute.xlu0 %342
    %346 = vset.pattern.permute.xlu0 0
    %347 = vperm.xlu0 %346, %v313
    %v348 = vpop.permute.xlu0 %347
    %351 = vset.pattern.permute.xlu0 0
    %352 = vperm.xlu0 %351, %v314
    %v353 = vpop.permute.xlu0 %352
    %v355 = vmul.f32 %v318, %v299
    %v356 = vmul.f32 %v323, %v300
    %v357 = vmul.f32 %v328, %v301
    %v358 = vmul.f32 %v333, %v302
    %v359 = vmul.f32 %v338, %v303
    %v360 = vmul.f32 %v343, %v304
    %v361 = vmul.f32 %v348, %v305
    %v362 = vmul.f32 %v353, %v306
    %v363 = vadd.f32 %v355, %v356
    %v364 = vadd.f32 %v363, %v357
    %v365 = vadd.f32 %v364, %v358
    %v366 = vadd.f32 %v365, %v359
    %v367 = vadd.f32 %v366, %v360
    %v368 = vadd.f32 %v367, %v361
    %v369 = vadd.f32 %v368, %v362
    %v370 = vrot.slane %v369, 4
    %v371 = vadd.f32 %v369, %v370
    %v372 = vrot.slane %v371, 2
    %v373 = vadd.f32 %v371, %v372
    %v374 = vrot.slane %v373, 1
    %v375 = vadd.f32 %v373, %v374
    %v376 = vld [vmem:[#allocation2] sm:$0x1]
    %378 = vset.pattern.permute.xlu0 0
    %379 = vperm.xlu0 %378, %v376
    %v380 = vpop.permute.xlu0 %379
    %v382 = vlaneseq
    %v383 = vshrl.u32 %v382, 7
    %v384 = vsub.s32 0, %v383
    %v385 = vrot.slane %v380, %v384
    %v386 = vadd.f32 %v375, %v385
    %v387 = vtanh.pop %v386
    %388 = vst [vmem:[#allocation3] sm:$0x1] %v387
    // Predicated region
    $region30: #{tpu_custom_call.1} parent=1 // pred_check
      _
    $region31: #{tpu_custom_call.1} parent=1 // pred_check_branch
      %390 = sbr.rel (0) target = $region33
    $region32: #{tpu_custom_call.1} parent=1 // pred_region
      %s392 = ssub.s32 16, 16
      %393 = vsyncadd [#allocation4], %s392
      %s395 = sshll.u32 [#allocation3], 4
      %s396 = int_to_ptr.vmem [resolvable:$true] %s395
      %398 = dma.vmem_to_hbm [thread:$0]  %s396, 16, %s7, [#allocation4]
    $region33: #{tpu_custom_call.1} parent=1 // pred_fallthru
      _
    // Predicated region
    $region34: #{tpu_custom_call.1} parent=1 // pred_check
      _
    $region35: #{tpu_custom_call.1} parent=1 // pred_check_branch
      %400 = sbr.rel (0) target = $region37
    $region36: #{tpu_custom_call.1} parent=1 // pred_region
      %401 = dma.done [#allocation4], 16
    $region37: #{tpu_custom_call.1} parent=1 // pred_fallthru
      _
    %402 = vsyncpa [#allocation4], 1

</llo_original>
